<compile_context>
chip_gen: v7x
topology: tpu7x:2x2x1
jax: 0.10.0
libtpu: 0.0.40
codegen_flags: <defaults>
</compile_context>

<pallas_src>
import numpy as np
import jax
import jax.numpy as jnp
from jax.experimental import pallas as pl
from jax.experimental.pallas import tpu as pltpu


# ----------------------------------------------------------------------------
# Wrapper-side (XLA) weight precomputation — hoisted out of the serial kernel.
# ----------------------------------------------------------------------------
def _pooled_axis_weights(start, extent, n_bins, n_grid, size):
    """Per-ROI pooled bilinear weights along one axis.

    start, extent: (K,) f32. Returns (K, n_bins, size) f32 with the within-bin
    sample averaging (1/n_grid) folded in.
    """
    start = start.astype(jnp.float32)
    extent = extent.astype(jnp.float32)
    bin_size = extent / float(n_bins)                              # (K,)
    pb = jnp.arange(n_bins, dtype=jnp.float32)                     # (nb,)
    ig = jnp.arange(n_grid, dtype=jnp.float32)                     # (ng,)
    coord = (start[:, None, None]
             + pb[None, :, None] * bin_size[:, None, None]
             + (ig[None, None, :] + 0.5) * bin_size[:, None, None] / float(n_grid))
    # coord: (K, nb, ng)
    valid = (coord >= -1.0) & (coord <= float(size))
    c = jnp.maximum(coord, 0.0)
    low = jnp.floor(c)
    at_edge = low >= float(size - 1)
    low = jnp.where(at_edge, float(size - 1), low)
    frac = jnp.where(at_edge, 0.0, c - low)
    high = jnp.minimum(low + 1.0, float(size - 1))
    low_i = low.astype(jnp.int32)[..., None]                       # (K,nb,ng,1)
    high_i = high.astype(jnp.int32)[..., None]
    frac_e = frac[..., None]
    idx = jnp.arange(size, dtype=jnp.int32)[None, None, None, :]   # (1,1,1,size)
    w = (jnp.where(idx == low_i, 1.0 - frac_e, 0.0)
         + jnp.where(idx == high_i, frac_e, 0.0))
    w = jnp.where(valid[..., None], w, 0.0)                        # (K,nb,ng,size)
    return w.sum(axis=2) / float(n_grid)                           # (K,nb,size)


# ----------------------------------------------------------------------------
# Kernel: two fused batched MXU contractions per (channel-tile, ROI) grid step.
# ----------------------------------------------------------------------------
def _roi_align_kernel(batch_idx_ref, wy_ref, wxt_ref, feat_ref, out_ref):
    del batch_idx_ref  # consumed only by the feat BlockSpec index_map
    fc = feat_ref[0].astype(jnp.float32)       # (Ct, H, W)
    wy = wy_ref[0]                             # (PH, H)  f32, 1/gh folded in
    wxt = wxt_ref[0]                           # (W, PW)  f32, 1/gw folded in
    ct = fc.shape[0]

    # u[c, h, pw] = sum_w fc[c, h, w] * wxt[w, pw]
    wxt_b = jnp.broadcast_to(wxt[None], (ct,) + wxt.shape)          # (Ct, W, PW)
    u = jax.lax.dot_general(
        fc, wxt_b,
        dimension_numbers=(((2,), (1,)), ((0,), (0,))),
        preferred_element_type=jnp.float32)                         # (Ct, H, PW)

    # out[c, ph, pw] = sum_h wy[ph, h] * u[c, h, pw]
    wy_b = jnp.broadcast_to(wy[None], (ct,) + wy.shape)             # (Ct, PH, H)
    out = jax.lax.dot_general(
        wy_b, u,
        dimension_numbers=(((2,), (1,)), ((0,), (0,))),
        preferred_element_type=jnp.float32)                         # (Ct, PH, PW)

    out_ref[0] = out.astype(out_ref.dtype)


# ----------------------------------------------------------------------------
# VMEM budgeting helpers.
# ----------------------------------------------------------------------------
def _padded_elems(shape):
    s = list(shape)
    if len(s) >= 2:
        s[-2] = -(-s[-2] // 8) * 8
    s[-1] = -(-s[-1] // 128) * 128
    n = 1
    for d in s:
        n *= int(d)
    return n


def _pick_channel_tile(C, H, W, itemsize, budget_bytes):
    """Largest divisor of C whose double-buffered feature block fits budget."""
    ct = C
    while ct > 1 and 2 * ct * H * W * itemsize > budget_bytes:
        ct -= 1
        while C % ct:
            ct -= 1
    return ct


# ----------------------------------------------------------------------------
# Public entry point.
# ----------------------------------------------------------------------------
def roi_align(feat, rois, roibatches, *, pool_h, pool_w, scale, sampling=2,
              channel_tile=None, feat_vmem_budget_bytes=8 << 20):
    """Pallas ROIAlign. feat: (N,C,H,W), rois: (K,4), roibatches: (K,1)."""
    assert sampling > 0, "fixed sampling ratio required"
    N, C, H, W = feat.shape
    K = rois.shape[0]
    gh = gw = int(sampling)

    rois = rois.astype(jnp.float32)
    batch_idx = jnp.reshape(roibatches, (-1,)).astype(jnp.int32)

    # --- sort ROIs by batch so consecutive grid steps reuse the feat block ---
    order = jnp.argsort(batch_idx)
    inv_order = jnp.argsort(order)
    batch_sorted = batch_idx[order]
    rois_sorted = rois[order]

    # --- per-ROI pooled interpolation weights (vectorized over K, in XLA) ----
    offset = 0.5  # aligned=True
    x1 = rois_sorted[:, 0] * scale - offset
    y1 = rois_sorted[:, 1] * scale - offset
    x2 = rois_sorted[:, 2] * scale - offset
    y2 = rois_sorted[:, 3] * scale - offset
    wy = _pooled_axis_weights(y1, y2 - y1, pool_h, gh, H)       # (K, PH, H)
    wx = _pooled_axis_weights(x1, x2 - x1, pool_w, gw, W)       # (K, PW, W)
    wxt = jnp.swapaxes(wx, 1, 2)                                # (K, W, PW)

    # --- channel tiling so the feature block fits VMEM (v7x: 64 MiB) --------
    itemsize = jnp.dtype(feat.dtype).itemsize
    ct = channel_tile or _pick_channel_tile(C, H, W, itemsize,
                                            feat_vmem_budget_bytes)
    assert C % ct == 0
    num_ct = C // ct

    # --- explicit VMEM limit (generous estimate, clamped) -------------------
    io_bytes = 2 * (itemsize * _padded_elems((ct, H, W))
                    + 4 * _padded_elems((pool_h, H))
                    + 4 * _padded_elems((W, pool_w))
                    + itemsize * _padded_elems((ct, pool_h, pool_w)))
    tmp_bytes = 4 * (_padded_elems((ct, W, pool_w))
                     + _padded_elems((ct, H, pool_w))
                     + _padded_elems((ct, pool_h, H))
                     + 2 * _padded_elems((ct, pool_h, pool_w)))
    vmem_limit = int(min(max(2 * (io_bytes + tmp_bytes) + (4 << 20), 32 << 20),
                         64 << 20))

    # Grid: channel tiles OUTER, ROIs INNER (last axis iterates fastest), so a
    # run of same-batch ROIs keeps the (1, Ct, H, W) feat block resident.
    out_sorted = pl.pallas_call(
        _roi_align_kernel,
        out_shape=jax.ShapeDtypeStruct((K, C, pool_h, pool_w), feat.dtype),
        grid_spec=pltpu.PrefetchScalarGridSpec(
            num_scalar_prefetch=1,
            grid=(num_ct, K),
            in_specs=[
                # per-ROI pooled weights (small, re-fetched per step)
                pl.BlockSpec((1, pool_h, H), lambda j, i, rb: (i, 0, 0)),
                pl.BlockSpec((1, W, pool_w), lambda j, i, rb: (i, 0, 0)),
                # channel tile of the ROI's batch element (data-dependent)
                pl.BlockSpec((1, ct, H, W), lambda j, i, rb: (rb[i], j, 0, 0)),
            ],
            out_specs=pl.BlockSpec((1, ct, pool_h, pool_w),
                                   lambda j, i, rb: (i, j, 0, 0)),
        ),
        compiler_params=pltpu.CompilerParams(
            dimension_semantics=("parallel", "parallel"),
            vmem_limit_bytes=vmem_limit),
    )(batch_sorted, wy, wxt, feat)

    # undo the batch-sort permutation
    return out_sorted[inv_order]


# ----------------------------------------------------------------------------
# Pure NumPy reference (direct translation of torchvision, aligned=True).
# ----------------------------------------------------------------------------
def roi_align_ref(feat, rois, roibatches, pool_h, pool_w, scale, sampling):
    feat = np.asarray(feat, np.float32)
    rois = np.asarray(rois, np.float32)
    batches = np.asarray(roibatches).reshape(-1).astype(int)
    N, C, H, W = feat.shape
    K = rois.shape[0]
    out = np.zeros((K, C, pool_h, pool_w), np.float32)
    for k in range(K):
        b = batches[k]
        x1 = rois[k, 0] * scale - 0.5
        y1 = rois[k, 1] * scale - 0.5
        x2 = rois[k, 2] * scale - 0.5
        y2 = rois[k, 3] * scale - 0.5
        roi_w, roi_h = x2 - x1, y2 - y1
        bin_h, bin_w = roi_h / pool_h, roi_w / pool_w
        gh = sampling if sampling > 0 else int(np.ceil(roi_h / pool_h))
        gw = sampling if sampling > 0 else int(np.ceil(roi_w / pool_w))
        count = max(gh * gw, 1)
        for ph in range(pool_h):
            for pw in range(pool_w):
                acc = np.zeros((C,), np.float32)
                for iy in range(gh):
                    y = y1 + ph * bin_h + (iy + 0.5) * bin_h / gh
                    for ix in range(gw):
                        x = x1 + pw * bin_w + (ix + 0.5) * bin_w / gw
                        if y < -1.0 or y > H or x < -1.0 or x > W:
                            continue
                        yc, xc = max(y, 0.0), max(x, 0.0)
                        y_lo, x_lo = int(yc), int(xc)
                        if y_lo >= H - 1:
                            y_hi = y_lo = H - 1
                            yc = float(y_lo)
                        else:
                            y_hi = y_lo + 1
                        if x_lo >= W - 1:
                            x_hi = x_lo = W - 1
                            xc = float(x_lo)
                        else:
                            x_hi = x_lo + 1
                        ly, lx = yc - y_lo, xc - x_lo
                        hy, hx = 1.0 - ly, 1.0 - lx
                        acc += (hy * hx * feat[b, :, y_lo, x_lo]
                                + hy * lx * feat[b, :, y_lo, x_hi]
                                + ly * hx * feat[b, :, y_hi, x_lo]
                                + ly * lx * feat[b, :, y_hi, x_hi])
                out[k, :, ph, pw] = acc / count
    return out


if __name__ == "__main__":
    N, C, H, W = 2, 4, 16, 16
    K = 3
    pool_h = pool_w = 4
    scale = 0.25          # feature map is 1/4 of the 64x64 input image
    sampling = 2

    key = jax.random.PRNGKey(0)
    k1, k2, k3, k4 = jax.random.split(key, 4)
    x1 = jax.random.uniform(k1, (K, 1), minval=0.0, maxval=40.0)
    y1 = jax.random.uniform(k2, (K, 1), minval=0.0, maxval=40.0)
    wh = jax.random.uniform(k3, (K, 2), minval=6.0, maxval=20.0)
    rois = jnp.concatenate([x1, y1, x1 + wh[:, :1], y1 + wh[:, 1:]], axis=1)
    roibatches = (jnp.arange(K) % N).astype(jnp.int32).reshape(K, 1)
    feat = jax.random.normal(k4, (N, C, H, W), jnp.float32)

    out = roi_align(feat, rois, roibatches,
                    pool_h=pool_h, pool_w=pool_w, scale=scale, sampling=sampling)
    out = jax.block_until_ready(out)

    ref = roi_align_ref(feat, rois, roibatches, pool_h, pool_w, scale, sampling)
    np.testing.assert_allclose(np.asarray(out), ref, rtol=2e-3, atol=2e-3)

    print("KERNEL_OK")
</pallas_src>

<mosaic_0001>
module attributes {stable_mosaic.version = 11 : i64} {
  func.func @_roi_align_kernel(%arg0: i32, %arg1: i32, %arg2: memref<3xi32, #tpu.memory_space<smem>>, %arg3: memref<1x4x16xf32, #tpu.memory_space<vmem>>, %arg4: memref<1x16x4xf32, #tpu.memory_space<vmem>>, %arg5: memref<1x4x16x16xf32, #tpu.memory_space<vmem>>, %arg6: memref<1x4x4x4xf32, #tpu.memory_space<vmem>>) attributes {dimension_semantics = [#tpu.dimension_semantics<parallel>, #tpu.dimension_semantics<parallel>], iteration_bounds = array<i64: 1, 3>, scalar_prefetch = 1 : i64, scratch_operands = 0 : i64, tpu.core_type = #tpu.core_type<tc>, window_params = [{transform_indices = @transform_0, window_bounds = array<i64: 1, 4, 16>}, {transform_indices = @transform_1, window_bounds = array<i64: 1, 16, 4>}, {transform_indices = @transform_2, window_bounds = array<i64: 1, 4, 16, 16>}, {transform_indices = @transform_3, window_bounds = array<i64: 1, 4, 4, 4>}]} {
    %c0 = arith.constant 0 : index
    %c0_0 = arith.constant 0 : index
    %c0_1 = arith.constant 0 : index
    %c0_2 = arith.constant 0 : index
    %0 = vector.load %arg5[%c0, %c0_0, %c0_1, %c0_2] : memref<1x4x16x16xf32, #tpu.memory_space<vmem>>, vector<1x4x16x16xf32>
    %1 = vector.shape_cast %0 : vector<1x4x16x16xf32> to vector<4x16x16xf32>
    %c0_3 = arith.constant 0 : index
    %c0_4 = arith.constant 0 : index
    %c0_5 = arith.constant 0 : index
    %2 = vector.load %arg3[%c0_3, %c0_4, %c0_5] : memref<1x4x16xf32, #tpu.memory_space<vmem>>, vector<1x4x16xf32>
    %3 = vector.shape_cast %2 : vector<1x4x16xf32> to vector<4x16xf32>
    %c0_6 = arith.constant 0 : index
    %c0_7 = arith.constant 0 : index
    %c0_8 = arith.constant 0 : index
    %4 = vector.load %arg4[%c0_6, %c0_7, %c0_8] : memref<1x16x4xf32, #tpu.memory_space<vmem>>, vector<1x16x4xf32>
    %5 = vector.shape_cast %4 : vector<1x16x4xf32> to vector<16x4xf32>
    %6 = vector.shape_cast %5 : vector<16x4xf32> to vector<1x16x4xf32>
    %7 = vector.shape_cast %6 : vector<1x16x4xf32> to vector<1x16x4xf32>
    %8 = vector.broadcast %7 : vector<1x16x4xf32> to vector<4x16x4xf32>
    %cst = arith.constant dense<0.000000e+00> : vector<4x16x4xf32>
    %9 = tpu.matmul %1, %8, %cst {dimension_numbers = #tpu.dot_dimension_numbers<[2], [1], [1], [2], [0, 0, 0, 1, 1, 2], [0], [0]>} : vector<4x16x16xf32>, vector<4x16x4xf32>, vector<4x16x4xf32> -> vector<4x16x4xf32>
    %10 = vector.shape_cast %3 : vector<4x16xf32> to vector<1x4x16xf32>
    %11 = vector.shape_cast %10 : vector<1x4x16xf32> to vector<1x4x16xf32>
    %12 = vector.broadcast %11 : vector<1x4x16xf32> to vector<4x4x16xf32>
    %cst_9 = arith.constant dense<0.000000e+00> : vector<4x4x4xf32>
    %13 = tpu.matmul %12, %9, %cst_9 {dimension_numbers = #tpu.dot_dimension_numbers<[2], [1], [1], [2], [0, 0, 0, 1, 1, 2], [0], [0]>} : vector<4x4x16xf32>, vector<4x16x4xf32>, vector<4x4x4xf32> -> vector<4x4x4xf32>
    %c0_10 = arith.constant 0 : index
    %c0_11 = arith.constant 0 : index
    %c0_12 = arith.constant 0 : index
    %c0_13 = arith.constant 0 : index
    %14 = vector.load %arg6[%c0_10, %c0_11, %c0_12, %c0_13] : memref<1x4x4x4xf32, #tpu.memory_space<vmem>>, vector<1x4x4x4xf32>
    %15 = vector.shape_cast %14 : vector<1x4x4x4xf32> to vector<4x4x4xf32>
    %16 = vector.shape_cast %13 : vector<4x4x4xf32> to vector<1x4x4x4xf32>
    tpu.vector_store %arg6[%c0_10, %c0_11, %c0_12, %c0_13], %16 {strides = array<i32>} : memref<1x4x4x4xf32, #tpu.memory_space<vmem>>, vector<1x4x4x4xf32>,
    return
  }
  func.func @transform_0(%arg0: i32, %arg1: i32, %arg2: memref<3xi32, #tpu.memory_space<smem>>) -> (i32, i32, i32) {
    %c0_i32 = arith.constant 0 : i32
    %c0_i32_0 = arith.constant 0 : i32
    %c0_i32_1 = arith.constant 0 : i32
    return %arg1, %c0_i32, %c0_i32_0 : i32, i32, i32
  }
  func.func @transform_1(%arg0: i32, %arg1: i32, %arg2: memref<3xi32, #tpu.memory_space<smem>>) -> (i32, i32, i32) {
    %c0_i32 = arith.constant 0 : i32
    %c0_i32_0 = arith.constant 0 : i32
    %c0_i32_1 = arith.constant 0 : i32
    return %arg1, %c0_i32, %c0_i32_0 : i32, i32, i32
  }
  func.func @transform_2(%arg0: i32, %arg1: i32, %arg2: memref<3xi32, #tpu.memory_space<smem>>) -> (i32, i32, i32, i32) {
    %0 = arith.index_cast %arg1 : i32 to index
    %1 = memref.load %arg2[%0] : memref<3xi32, #tpu.memory_space<smem>>
    %c0_i32 = arith.constant 0 : i32
    %c0_i32_0 = arith.constant 0 : i32
    %c0_i32_1 = arith.constant 0 : i32
    return %1, %arg0, %c0_i32, %c0_i32_0 : i32, i32, i32, i32
  }
  func.func @transform_3(%arg0: i32, %arg1: i32, %arg2: memref<3xi32, #tpu.memory_space<smem>>) -> (i32, i32, i32, i32) {
    %c0_i32 = arith.constant 0 : i32
    %c0_i32_0 = arith.constant 0 : i32
    %c0_i32_1 = arith.constant 0 : i32
    return %arg1, %arg0, %c0_i32, %c0_i32_0 : i32, i32, i32, i32
  }
}

</mosaic_0001>

<llo_original>
// kernel: tpu_custom_call.1
$region0: #{tpu_custom_call.1}
  #allocation0 [shape = 'u32[]', space=smem, size = 0x4, offset = 0x4, fixed_abs, tag = 'smem constant byte address 0x4 - core index']
  #allocation1 [shape = 'u32[144,128]{1,0:T(1,128)}', space=vmem, size = 0x12000, scoped, tag = 'internal scratch']
  #allocation2 [shape = 's32[1]{0}', space=sflag, size = 0x4, scoped, tag = 'scoped memory for tpu_custom_call.1']
  #allocation3 [shape = 'u8[512]{0}', space=smem, size = 0x200, scoped, tag = 'prefetched SMEM operand 0']
  %s0 = inlined_call_operand.vmem [shape: s32[3], index: 0, kind: input, shape index: {}]
  %s1 = inlined_call_operand.vmem [shape: f32[3,4,16], index: 1, kind: input, shape index: {}]
  %s2 = inlined_call_operand.vmem [shape: f32[3,16,4], index: 2, kind: input, shape index: {}]
  %s3 = inlined_call_operand.hbm [shape: f32[2,4,16,16], index: 3, kind: input, shape index: {}]
  %s4 = inlined_call_operand.hbm [shape: f32[3,4,4,4], index: 4, kind: output, shape index: {}]
  %s5 = sld [smem:[#allocation0]]
  $region49: #{tpu_custom_call.1} parent=0
    _
  %s7 = ssub.s32 1, %s5
  %s8 = scalar_select 0, %s7, %s5
  %s9 = sshll.u32 %s0, 4
  %s10 = int_to_ptr.vmem [resolvable:$true] %s9
  %12 = dma.vmem_to_smem %s10, 16, [#allocation3], [#allocation2]
  %13 = dma.done [#allocation2], 16
  %14 = sfence
  $region1: #{tpu_custom_call.1} parent=0
    #allocation4 [shape = 'u8[65536]{0}', space=vmem, size = 0x10000, scoped, tag = 'input window, operand 3']
    #allocation5 [shape = 's32[2]{0}', space=sflag, size = 0x8, scoped, tag = 'scoped memory for tpu_custom_call.1']
    #allocation6 [shape = 's32[2]{0}', space=sflag, size = 0x8, scoped, tag = 'scoped memory for tpu_custom_call.1']
    #allocation7 [shape = 'u8[16384]{0}', space=vmem, size = 0x4000, scoped, tag = 'output window, operand 0']
    %15 = vsyncpa [#allocation5], 0
    %s16 = scalar_lea.sflag [#allocation5], 1
    %17 = vsyncpa %s16, 0
    %18 = vsyncpa [#allocation6], 0
    %s19 = scalar_lea.sflag [#allocation6], 1
    %20 = vsyncpa %s19, 0
    loop: start=0, step=1, limit=5
    $region2: #{tpu_custom_call.1} parent=1 // loop_pre_header
      _
    $region3: #{tpu_custom_call.1} parent=1 // loop_header
      %s22 = sphi 0, %s26
      %p23 = scmp.ge.s32.totalorder %s22, 5
      %s29 = sphi 0, %s41
      %s30 = sphi 0, %s37
      %s31 = sphi 0, %s29
      %s32 = sphi 0, %s30
      %s33 = sphi 0, %s31
      %s34 = sphi 0, %s32
      %s44 = sphi 0, %s46
      %s47 = sphi 0, %s44
      %s48 = sphi 0, %s47
      %s64 = sphi 0, %s48
      %s70 = sphi 0, %s72
      %s73 = sphi 0, %s70
      %s74 = sphi 0, %s73
      %s90 = sphi 0, %s74
      %s100 = sphi 0, %s102
      %s103 = sphi 0, %s100
      %s104 = sphi 0, %s103
      %s120 = sphi 0, %s104
      %s128 = sphi 0, %s130
      %s131 = sphi 0, %s128
      %s132 = sphi 0, %s131
      %s148 = sphi 0, %s132
    $region4: #{tpu_custom_call.1} parent=1 // loop_header_branch
      %25 = sbr.rel (%p23) target = $region8
    $region5: #{tpu_custom_call.1} parent=1 // loop_body
      %s27 = ssub.s32 %s22, 1
      %s28 = ssub.s32 %s22, 2
      %s35 = sadd.s32 1, %s30
      %p36 = scmp.ge.s32.totalorder %s35, 3
      %s37 = scalar_select %p36, 0, %s35
      %s38 = sadd.s32 1, %s29
      %s39 = scalar_select %p36, %s38, %s29
      %p40 = scmp.ge.s32.totalorder %s39, 1
      %s41 = scalar_select %p40, 0, %s39
      %s42 = ssub.s32 %s30, %s37
      %p43 = scmp.eq.s32.totalorder %s42, 0
      %s45 = sadd.s32 %s44, 1
      %s46 = scalar_select %p43, %s44, %s45
      %p49 = pneg %p43
      %p50 = scmp.eq.s32.totalorder %s22, 2
      %p51 = por %p49, %p50
      %p52 = scmp.ne.s32.totalorder %s44, %s47
      %p53 = scmp.eq.s32.totalorder %s22, 0
      %p54 = por %p52, %p53
      %p55 = scmp.ne.s32.totalorder %s44, %s47
      %p56 = scmp.eq.s32.totalorder %s27, 2
      %p57 = por %p55, %p56
      %p58 = scmp.ne.s32.totalorder %s47, %s48
      %p59 = scmp.eq.s32.totalorder %s27, 0
      %p60 = por %p58, %p59
      %p61 = scmp.ne.s32.totalorder %s47, %s48
      %p62 = scmp.eq.s32.totalorder %s28, 2
      %p63 = por %p61, %p62
      %p65 = scmp.ne.s32.totalorder %s48, %s64
      %p66 = scmp.eq.s32.totalorder %s28, 0
      %p67 = por %p65, %p66
      %s68 = ssub.s32 %s30, %s37
      %p69 = scmp.eq.s32.totalorder %s68, 0
      %s71 = sadd.s32 %s70, 1
      %s72 = scalar_select %p69, %s70, %s71
      %p75 = pneg %p69
      %p76 = scmp.eq.s32.totalorder %s22, 2
      %p77 = por %p75, %p76
      %p78 = scmp.ne.s32.totalorder %s70, %s73
      %p79 = scmp.eq.s32.totalorder %s22, 0
      %p80 = por %p78, %p79
      %p81 = scmp.ne.s32.totalorder %s70, %s73
      %p82 = scmp.eq.s32.totalorder %s27, 2
      %p83 = por %p81, %p82
      %p84 = scmp.ne.s32.totalorder %s73, %s74
      %p85 = scmp.eq.s32.totalorder %s27, 0
      %p86 = por %p84, %p85
      %p87 = scmp.ne.s32.totalorder %s73, %s74
      %p88 = scmp.eq.s32.totalorder %s28, 2
      %p89 = por %p87, %p88
      %p91 = scmp.ne.s32.totalorder %s74, %s90
      %p92 = scmp.eq.s32.totalorder %s28, 0
      %p93 = por %p91, %p92
      %s94 = sld [smem:[#allocation3 + %s30]]
      %s95 = sld [smem:[#allocation3 + %s37]]
      %s96 = ssub.s32 %s94, %s95
      %s97 = ssub.s32 %s29, %s41
      %s98 = sor.u32 %s96, %s97
      %p99 = scmp.eq.s32.totalorder %s98, 0
      %s101 = sadd.s32 %s100, 1
      %s102 = scalar_select %p99, %s100, %s101
      %p105 = pneg %p99
      %p106 = scmp.eq.s32.totalorder %s22, 2
      %p107 = por %p105, %p106
      %p108 = scmp.ne.s32.totalorder %s100, %s103
      %p109 = scmp.eq.s32.totalorder %s22, 0
      %p110 = por %p108, %p109
      %p111 = scmp.ne.s32.totalorder %s100, %s103
      %p112 = scmp.eq.s32.totalorder %s27, 2
      %p113 = por %p111, %p112
      %p114 = scmp.ne.s32.totalorder %s103, %s104
      %p115 = scmp.eq.s32.totalorder %s27, 0
      %p116 = por %p114, %p115
      %p117 = scmp.ne.s32.totalorder %s103, %s104
      %p118 = scmp.eq.s32.totalorder %s28, 2
      %p119 = por %p117, %p118
      %p121 = scmp.ne.s32.totalorder %s104, %s120
      %p122 = scmp.eq.s32.totalorder %s28, 0
      %p123 = por %p121, %p122
      %s124 = ssub.s32 %s30, %s37
      %s125 = ssub.s32 %s29, %s41
      %s126 = sor.u32 %s124, %s125
      %p127 = scmp.eq.s32.totalorder %s126, 0
      %s129 = sadd.s32 %s128, 1
      %s130 = scalar_select %p127, %s128, %s129
      %p133 = pneg %p127
      %p134 = scmp.eq.s32.totalorder %s22, 2
      %p135 = por %p133, %p134
      %p136 = scmp.ne.s32.totalorder %s128, %s131
      %p137 = scmp.eq.s32.totalorder %s22, 0
      %p138 = por %p136, %p137
      %p139 = scmp.ne.s32.totalorder %s128, %s131
      %p140 = scmp.eq.s32.totalorder %s27, 2
      %p141 = por %p139, %p140
      %p142 = scmp.ne.s32.totalorder %s131, %s132
      %p143 = scmp.eq.s32.totalorder %s27, 0
      %p144 = por %p142, %p143
      %p145 = scmp.ne.s32.totalorder %s131, %s132
      %p146 = scmp.eq.s32.totalorder %s28, 2
      %p147 = por %p145, %p146
      %p149 = scmp.ne.s32.totalorder %s132, %s148
      %p150 = scmp.eq.s32.totalorder %s28, 0
      %p151 = por %p149, %p150
      %p152 = scmp.le.s32.totalorder 1, %s22
      %p153 = scmp.lt.s32.totalorder %s22, 4
      %p154 = pnand %p152, %p153
      %p155 = pneg %p154
      // Predicated region
      $region9: #{tpu_custom_call.1} parent=5 // pred_check
        _
      $region10: #{tpu_custom_call.1} parent=5 // pred_check_branch
        %157 = sbr.rel (%p154) target = $region12
      $region11: #{tpu_custom_call.1} parent=5 // pred_region
        %s158 = ssub.s32 %s22, 1
      $region12: #{tpu_custom_call.1} parent=5 // pred_fallthru
        _
      %p159 = scmp.lt.s32.totalorder %s22, 3
      // Predicated region
      $region13: #{tpu_custom_call.1} parent=5 // pred_check
        %p160 = pneg %p159
      $region14: #{tpu_custom_call.1} parent=5 // pred_check_branch
        %162 = sbr.rel (%p160) target = $region16
      $region15: #{tpu_custom_call.1} parent=5 // pred_region
        // Predicated region
        $region17: #{tpu_custom_call.1} parent=15 // pred_check
          %p163 = pneg %p54
        $region18: #{tpu_custom_call.1} parent=15 // pred_check_branch
          %165 = sbr.rel (%p163) target = $region20
        $region19: #{tpu_custom_call.1} parent=15 // pred_region
          %p166 = scmp.lt.s32.totalorder %s30, 2
          %s167 = scalar_select %p166, %s30, 2
          %s168 = smul.addr %s167, 4
          %s169 = scalar_lea.vmem %s1, %s168
        $region20: #{tpu_custom_call.1} parent=15 // pred_fallthru
          _
        // Predicated region
        $region21: #{tpu_custom_call.1} parent=15 // pred_check
          %p170 = pneg %p80
        $region22: #{tpu_custom_call.1} parent=15 // pred_check_branch
          %172 = sbr.rel (%p170) target = $region24
        $region23: #{tpu_custom_call.1} parent=15 // pred_region
          %p173 = scmp.lt.s32.totalorder %s30, 2
          %s174 = scalar_select %p173, %s30, 2
          %s175 = smul.addr %s174, 2
          %s176 = smul.addr %s175, 8
          %s177 = scalar_lea.vmem %s2, %s176
        $region24: #{tpu_custom_call.1} parent=15 // pred_fallthru
          _
        // Predicated region
        $region25: #{tpu_custom_call.1} parent=15 // pred_check
          %p178 = pneg %p110
        $region26: #{tpu_custom_call.1} parent=15 // pred_check_branch
          %180 = sbr.rel (%p178) target = $region28
        $region27: #{tpu_custom_call.1} parent=15 // pred_region
          %s181 = sand.u32 %s100, 1
          %s182 = scalar_lea.sflag [#allocation5], %s181
          %s183 = sand.u32 %s100, 1
          %s184 = smul.addr %s183, 64
          %s185 = scalar_lea.vmem [#allocation4], %s184
          %s186 = sld [smem:[#allocation3 + %s30]]
          %s187 = smul.u32 4, %s29
          %s189 = ssub.s32 1024, 1024
          %190 = vsyncadd %s182, %s189
          %s191 = smul.addr %s187, 2
          %s192 = smul.addr %s186, 8
          %s193 = sadd.s32 %s191, %s192
          %s194 = smul.addr %s193, 128
          %s195 = scalar_lea.hbm %s3, %s194
          %s196 = sshll.u32 %s185, 4
          %s197 = int_to_ptr.vmem [resolvable:$true] %s196
          %202 = dma.hbm_to_vmem [thread:$0]  %s195, 1024, %s197, %s182, 128, 128, 8
        $region28: #{tpu_custom_call.1} parent=15 // pred_fallthru
          _
      $region16: #{tpu_custom_call.1} parent=5 // pred_fallthru
        _
      %p203 = scmp.le.s32.totalorder 1, %s22
      %p204 = scmp.lt.s32.totalorder %s22, 4
      %p205 = pnand %p203, %p204
      %p206 = pneg %p205
      // Predicated region
      $region29: #{tpu_custom_call.1} parent=5 // pred_check
        _
      $region30: #{tpu_custom_call.1} parent=5 // pred_check_branch
        %208 = sbr.rel (%p205) target = $region32
      $region31: #{tpu_custom_call.1} parent=5 // pred_region
        %s209 = ssub.s32 %s22, 1
        %s210 = sand.u32 %s103, 1
        %s211 = scalar_lea.sflag [#allocation5], %s210
        %s212 = sand.u32 %s103, 1
        %s213 = smul.addr %s212, 64
        %s214 = scalar_lea.vmem [#allocation4], %s213
        // Predicated region
        $region33: #{tpu_custom_call.1} parent=31 // pred_check
          %p215 = pneg %p116
        $region34: #{tpu_custom_call.1} parent=31 // pred_check_branch
          %217 = sbr.rel (%p215) target = $region36
        $region35: #{tpu_custom_call.1} parent=31 // pred_region
          %218 = dma.done %s211, 1024
        $region36: #{tpu_custom_call.1} parent=31 // pred_fallthru
          _
        %p219 = scmp.lt.s32.totalorder %s32, 2
        %s220 = scalar_select %p219, %s32, 2
        %s221 = smul.addr %s220, 4
        %s222 = scalar_lea.vmem %s1, %s221
        %p223 = pneg %p60
        %p224 = pneg %p57
        %p225 = scmp.lt.s32.totalorder %s32, 2
        %s226 = scalar_select %p225, %s32, 2
        %s227 = smul.addr %s226, 2
        %s228 = smul.addr %s227, 8
        %s229 = scalar_lea.vmem %s2, %s228
        %p230 = pneg %p86
        %p231 = pneg %p83
        %s232 = sand.u32 %s103, 1
        %s233 = scalar_lea.sflag [#allocation5], %s232
        %s234 = sand.u32 %s103, 1
        %s235 = smul.addr %s234, 64
        %s236 = scalar_lea.vmem [#allocation4], %s235
        %p237 = pneg %p116
        %p238 = pneg %p113
        %p239 = pneg %p144
        %p240 = pneg %p141
        %s241 = sand.u32 %s131, 1
        %s242 = scalar_lea.sflag [#allocation6], %s241
        %s243 = sand.u32 %s131, 1
        %s244 = smul.addr %s243, 16
        %s245 = scalar_lea.vmem [#allocation7], %s244
        %p246 = scmp.lt.s32.totalorder %s32, 2
        %s247 = scalar_select %p246, %s32, 2
        %s248 = smul.addr %s247, 4
        %s249 = scalar_lea.vmem %s1, %s248
        %p250 = scmp.lt.s32.totalorder %s32, 2
        %s251 = scalar_select %p250, %s32, 2
        %s252 = smul.addr %s251, 2
        %s253 = smul.addr %s252, 8
        %s254 = scalar_lea.vmem %s2, %s253
        %s255 = sld [smem:[#allocation3 + %s32]]
        %s256 = smul.u32 4, %s31
        %s257 = smul.u32 4, %s31
        %v258 = vld [vmem:[%s214] sm:$0xff]
        %v259 = vld [vmem:[%s214 + $0x8] sm:$0xff]
        %v260 = vld [vmem:[%s214 + $0x10] sm:$0xff]
        %v261 = vld [vmem:[%s214 + $0x18] sm:$0xff]
        %v262 = vld [vmem:[%s214 + $0x20] sm:$0xff]
        %v263 = vld [vmem:[%s214 + $0x28] sm:$0xff]
        %v264 = vld [vmem:[%s214 + $0x30] sm:$0xff]
        %v265 = vld [vmem:[%s214 + $0x38] sm:$0xff]
        %v266 = vld [vmem:[%s249] sm:$0xf]
        %v267 = vld [vmem:[%s254] sm:$0xff]
        %v268 = vld [vmem:[%s254 + $0x8] sm:$0xff]
        %vm269 = vcmask 130048
        %v271 = vsel %vm269, %v258, 0
        %v274 = vsel %vm269, %v259, 0
        %276 = vmatprep.subr.mxu0 0.0
        %277 = vmatpush1.msra.mxu0 %v267
        %278 = vmatprep.subr.mxu0 0.0
        %279 = vmatpush1.msra.mxu0 %v268
        %280 = vmatprep.subr.mxu0 0.0
        %281 = vmatpush1.msra.mxu0 0.0
        %282 = vmatprep.subr.mxu0 0.0
        %283 = vmatpush1.msra.mxu0 0.0
        %284 = vmatprep.subr.mxu0 0.0
        %285 = vmatpush1.msra.mxu0 0.0
        %286 = vmatprep.subr.mxu0 0.0
        %287 = vmatpush1.msra.mxu0 0.0
        %288 = vmatprep.subr.mxu0 0.0
        %289 = vmatpush1.msra.mxu0 0.0
        %290 = vmatprep.subr.mxu0 0.0
        %291 = vmatpush1.msra.mxu0 0.0
        %292 = vmatprep.subr.mxu0 0.0
        %293 = vmatpush1.msra.mxu0 0.0
        %294 = vmatprep.subr.mxu0 0.0
        %295 = vmatpush1.msra.mxu0 0.0
        %296 = vmatprep.subr.mxu0 0.0
        %297 = vmatpush1.msra.mxu0 0.0
        %298 = vmatprep.subr.mxu0 0.0
        %299 = vmatpush1.msra.mxu0 0.0
        %300 = vmatprep.subr.mxu0 0.0
        %301 = vmatpush1.msra.mxu0 0.0
        %302 = vmatprep.subr.mxu0 0.0
        %303 = vmatpush1.msra.mxu0 0.0
        %304 = vmatprep.subr.mxu0 0.0
        %305 = vmatpush1.msra.mxu0 0.0
        %306 = vmatprep.subr.mxu0 0.0
        %307 = vmatpush1.msra.mxu0 0.0
        %308 = vmatprep.subr.mxu0 0.0
        %309 = vmatpush1.msra.mxu0 0.0
        %310 = vmatprep.subr.mxu0 0.0
        %311 = vmatpush1.msra.mxu0 0.0
        %312 = vmatprep.subr.mxu0 0.0
        %313 = vmatpush1.msra.mxu0 0.0
        %314 = vmatprep.subr.mxu0 0.0
        %315 = vmatpush1.msra.mxu0 0.0
        %316 = vmatprep.subr.mxu0 0.0
        %317 = vmatpush1.msra.mxu0 0.0
        %318 = vmatprep.subr.mxu0 0.0
        %319 = vmatpush1.msra.mxu0 0.0
        %320 = vmatprep.subr.mxu0 0.0
        %321 = vmatpush1.msra.mxu0 0.0
        %322 = vmatprep.subr.mxu0 0.0
        %323 = vmatpush1.msra.mxu0 0.0
        %324 = vmatprep.subr.mxu0 0.0
        %325 = vmatpush1.msra.mxu0 0.0
        %326 = vmatprep.subr.mxu0 0.0
        %327 = vmatpush1.msra.mxu0 0.0
        %328 = vmatprep.subr.mxu0 0.0
        %329 = vmatpush1.msra.mxu0 0.0
        %330 = vmatprep.subr.mxu0 0.0
        %331 = vmatpush1.msra.mxu0 0.0
        %332 = vmatprep.subr.mxu0 0.0
        %333 = vmatpush1.msra.mxu0 0.0
        %334 = vmatprep.subr.mxu0 0.0
        %335 = vmatpush1.msra.mxu0 0.0
        %336 = vmatprep.subr.mxu0 0.0
        %337 = vmatpush1.msra.mxu0 0.0
        %338 = vmatprep.subr.mxu0 0.0
        %339 = vmatpush1.msra.mxu0 0.0
        %340 = vmatprep.mubr.f32.mxu0 0.0
        %341 = vmatmul.mubr.f32.gmra.mrb[0].mxu0 %v271
        %v342 = vpop.f32.mrb[0].mxu0
        %v343 = vadd.f32 0.0, %v342
        %v344 = vpop.f32.mrb[0].mxu0
        %345 = vmatprep.mubr.f32.mxu0 0.0
        %346 = vmatmul.mubr.f32.gmra.mrb[0].mxu0 %v274
        %v347 = vpop.f32.mrb[0].mxu0
        %v348 = vadd.f32 0.0, %v347
        %v349 = vpop.f32.mrb[0].mxu0
        %350 = vdwg.mxu0
        %v352 = vsel %vm269, %v260, 0
        %v355 = vsel %vm269, %v261, 0
        %357 = vmatprep.subr.mxu0 0.0
        %358 = vmatpush1.msra.mxu0 %v267
        %359 = vmatprep.subr.mxu0 0.0
        %360 = vmatpush1.msra.mxu0 %v268
        %361 = vmatprep.subr.mxu0 0.0
        %362 = vmatpush1.msra.mxu0 0.0
        %363 = vmatprep.subr.mxu0 0.0
        %364 = vmatpush1.msra.mxu0 0.0
        %365 = vmatprep.subr.mxu0 0.0
        %366 = vmatpush1.msra.mxu0 0.0
        %367 = vmatprep.subr.mxu0 0.0
        %368 = vmatpush1.msra.mxu0 0.0
        %369 = vmatprep.subr.mxu0 0.0
        %370 = vmatpush1.msra.mxu0 0.0
        %371 = vmatprep.subr.mxu0 0.0
        %372 = vmatpush1.msra.mxu0 0.0
        %373 = vmatprep.subr.mxu0 0.0
        %374 = vmatpush1.msra.mxu0 0.0
        %375 = vmatprep.subr.mxu0 0.0
        %376 = vmatpush1.msra.mxu0 0.0
        %377 = vmatprep.subr.mxu0 0.0
        %378 = vmatpush1.msra.mxu0 0.0
        %379 = vmatprep.subr.mxu0 0.0
        %380 = vmatpush1.msra.mxu0 0.0
        %381 = vmatprep.subr.mxu0 0.0
        %382 = vmatpush1.msra.mxu0 0.0
        %383 = vmatprep.subr.mxu0 0.0
        %384 = vmatpush1.msra.mxu0 0.0
        %385 = vmatprep.subr.mxu0 0.0
        %386 = vmatpush1.msra.mxu0 0.0
        %387 = vmatprep.subr.mxu0 0.0
        %388 = vmatpush1.msra.mxu0 0.0
        %389 = vmatprep.subr.mxu0 0.0
        %390 = vmatpush1.msra.mxu0 0.0
        %391 = vmatprep.subr.mxu0 0.0
        %392 = vmatpush1.msra.mxu0 0.0
        %393 = vmatprep.subr.mxu0 0.0
        %394 = vmatpush1.msra.mxu0 0.0
        %395 = vmatprep.subr.mxu0 0.0
        %396 = vmatpush1.msra.mxu0 0.0
        %397 = vmatprep.subr.mxu0 0.0
        %398 = vmatpush1.msra.mxu0 0.0
        %399 = vmatprep.subr.mxu0 0.0
        %400 = vmatpush1.msra.mxu0 0.0
        %401 = vmatprep.subr.mxu0 0.0
        %402 = vmatpush1.msra.mxu0 0.0
        %403 = vmatprep.subr.mxu0 0.0
        %404 = vmatpush1.msra.mxu0 0.0
        %405 = vmatprep.subr.mxu0 0.0
        %406 = vmatpush1.msra.mxu0 0.0
        %407 = vmatprep.subr.mxu0 0.0
        %408 = vmatpush1.msra.mxu0 0.0
        %409 = vmatprep.subr.mxu0 0.0
        %410 = vmatpush1.msra.mxu0 0.0
        %411 = vmatprep.subr.mxu0 0.0
        %412 = vmatpush1.msra.mxu0 0.0
        %413 = vmatprep.subr.mxu0 0.0
        %414 = vmatpush1.msra.mxu0 0.0
        %415 = vmatprep.subr.mxu0 0.0
        %416 = vmatpush1.msra.mxu0 0.0
        %417 = vmatprep.subr.mxu0 0.0
        %418 = vmatpush1.msra.mxu0 0.0
        %419 = vmatprep.subr.mxu0 0.0
        %420 = vmatpush1.msra.mxu0 0.0
        %421 = vmatprep.mubr.f32.mxu0 0.0
        %422 = vmatmul.mubr.f32.gmra.mrb[0].mxu0 %v352
        %v423 = vpop.f32.mrb[0].mxu0
        %v424 = vadd.f32 0.0, %v423
        %v425 = vpop.f32.mrb[0].mxu0
        %426 = vmatprep.mubr.f32.mxu0 0.0
        %427 = vmatmul.mubr.f32.gmra.mrb[0].mxu0 %v355
        %v428 = vpop.f32.mrb[0].mxu0
        %v429 = vadd.f32 0.0, %v428
        %v430 = vpop.f32.mrb[0].mxu0
        %431 = vdwg.mxu0
        %v433 = vsel %vm269, %v262, 0
        %v436 = vsel %vm269, %v263, 0
        %438 = vmatprep.subr.mxu0 0.0
        %439 = vmatpush1.msra.mxu0 %v267
        %440 = vmatprep.subr.mxu0 0.0
        %441 = vmatpush1.msra.mxu0 %v268
        %442 = vmatprep.subr.mxu0 0.0
        %443 = vmatpush1.msra.mxu0 0.0
        %444 = vmatprep.subr.mxu0 0.0
        %445 = vmatpush1.msra.mxu0 0.0
        %446 = vmatprep.subr.mxu0 0.0
        %447 = vmatpush1.msra.mxu0 0.0
        %448 = vmatprep.subr.mxu0 0.0
        %449 = vmatpush1.msra.mxu0 0.0
        %450 = vmatprep.subr.mxu0 0.0
        %451 = vmatpush1.msra.mxu0 0.0
        %452 = vmatprep.subr.mxu0 0.0
        %453 = vmatpush1.msra.mxu0 0.0
        %454 = vmatprep.subr.mxu0 0.0
        %455 = vmatpush1.msra.mxu0 0.0
        %456 = vmatprep.subr.mxu0 0.0
        %457 = vmatpush1.msra.mxu0 0.0
        %458 = vmatprep.subr.mxu0 0.0
        %459 = vmatpush1.msra.mxu0 0.0
        %460 = vmatprep.subr.mxu0 0.0
        %461 = vmatpush1.msra.mxu0 0.0
        %462 = vmatprep.subr.mxu0 0.0
        %463 = vmatpush1.msra.mxu0 0.0
        %464 = vmatprep.subr.mxu0 0.0
        %465 = vmatpush1.msra.mxu0 0.0
        %466 = vmatprep.subr.mxu0 0.0
        %467 = vmatpush1.msra.mxu0 0.0
        %468 = vmatprep.subr.mxu0 0.0
        %469 = vmatpush1.msra.mxu0 0.0
        %470 = vmatprep.subr.mxu0 0.0
        %471 = vmatpush1.msra.mxu0 0.0
        %472 = vmatprep.subr.mxu0 0.0
        %473 = vmatpush1.msra.mxu0 0.0
        %474 = vmatprep.subr.mxu0 0.0
        %475 = vmatpush1.msra.mxu0 0.0
        %476 = vmatprep.subr.mxu0 0.0
        %477 = vmatpush1.msra.mxu0 0.0
        %478 = vmatprep.subr.mxu0 0.0
        %479 = vmatpush1.msra.mxu0 0.0
        %480 = vmatprep.subr.mxu0 0.0
        %481 = vmatpush1.msra.mxu0 0.0
        %482 = vmatprep.subr.mxu0 0.0
        %483 = vmatpush1.msra.mxu0 0.0
        %484 = vmatprep.subr.mxu0 0.0
        %485 = vmatpush1.msra.mxu0 0.0
        %486 = vmatprep.subr.mxu0 0.0
        %487 = vmatpush1.msra.mxu0 0.0
        %488 = vmatprep.subr.mxu0 0.0
        %489 = vmatpush1.msra.mxu0 0.0
        %490 = vmatprep.subr.mxu0 0.0
        %491 = vmatpush1.msra.mxu0 0.0
        %492 = vmatprep.subr.mxu0 0.0
        %493 = vmatpush1.msra.mxu0 0.0
        %494 = vmatprep.subr.mxu0 0.0
        %495 = vmatpush1.msra.mxu0 0.0
        %496 = vmatprep.subr.mxu0 0.0
        %497 = vmatpush1.msra.mxu0 0.0
        %498 = vmatprep.subr.mxu0 0.0
        %499 = vmatpush1.msra.mxu0 0.0
        %500 = vmatprep.subr.mxu0 0.0
        %501 = vmatpush1.msra.mxu0 0.0
        %502 = vmatprep.mubr.f32.mxu0 0.0
        %503 = vmatmul.mubr.f32.gmra.mrb[0].mxu0 %v433
        %v504 = vpop.f32.mrb[0].mxu0
        %v505 = vadd.f32 0.0, %v504
        %v506 = vpop.f32.mrb[0].mxu0
        %507 = vmatprep.mubr.f32.mxu0 0.0
        %508 = vmatmul.mubr.f32.gmra.mrb[0].mxu0 %v436
        %v509 = vpop.f32.mrb[0].mxu0
        %v510 = vadd.f32 0.0, %v509
        %v511 = vpop.f32.mrb[0].mxu0
        %512 = vdwg.mxu0
        %v514 = vsel %vm269, %v264, 0
        %v517 = vsel %vm269, %v265, 0
        %519 = vmatprep.subr.mxu0 0.0
        %520 = vmatpush1.msra.mxu0 %v267
        %521 = vmatprep.subr.mxu0 0.0
        %522 = vmatpush1.msra.mxu0 %v268
        %523 = vmatprep.subr.mxu0 0.0
        %524 = vmatpush1.msra.mxu0 0.0
        %525 = vmatprep.subr.mxu0 0.0
        %526 = vmatpush1.msra.mxu0 0.0
        %527 = vmatprep.subr.mxu0 0.0
        %528 = vmatpush1.msra.mxu0 0.0
        %529 = vmatprep.subr.mxu0 0.0
        %530 = vmatpush1.msra.mxu0 0.0
        %531 = vmatprep.subr.mxu0 0.0
        %532 = vmatpush1.msra.mxu0 0.0
        %533 = vmatprep.subr.mxu0 0.0
        %534 = vmatpush1.msra.mxu0 0.0
        %535 = vmatprep.subr.mxu0 0.0
        %536 = vmatpush1.msra.mxu0 0.0
        %537 = vmatprep.subr.mxu0 0.0
        %538 = vmatpush1.msra.mxu0 0.0
        %539 = vmatprep.subr.mxu0 0.0
        %540 = vmatpush1.msra.mxu0 0.0
        %541 = vmatprep.subr.mxu0 0.0
        %542 = vmatpush1.msra.mxu0 0.0
        %543 = vmatprep.subr.mxu0 0.0
        %544 = vmatpush1.msra.mxu0 0.0
        %545 = vmatprep.subr.mxu0 0.0
        %546 = vmatpush1.msra.mxu0 0.0
        %547 = vmatprep.subr.mxu0 0.0
        %548 = vmatpush1.msra.mxu0 0.0
        %549 = vmatprep.subr.mxu0 0.0
        %550 = vmatpush1.msra.mxu0 0.0
        %551 = vmatprep.subr.mxu0 0.0
        %552 = vmatpush1.msra.mxu0 0.0
        %553 = vmatprep.subr.mxu0 0.0
        %554 = vmatpush1.msra.mxu0 0.0
        %555 = vmatprep.subr.mxu0 0.0
        %556 = vmatpush1.msra.mxu0 0.0
        %557 = vmatprep.subr.mxu0 0.0
        %558 = vmatpush1.msra.mxu0 0.0
        %559 = vmatprep.subr.mxu0 0.0
        %560 = vmatpush1.msra.mxu0 0.0
        %561 = vmatprep.subr.mxu0 0.0
        %562 = vmatpush1.msra.mxu0 0.0
        %563 = vmatprep.subr.mxu0 0.0
        %564 = vmatpush1.msra.mxu0 0.0
        %565 = vmatprep.subr.mxu0 0.0
        %566 = vmatpush1.msra.mxu0 0.0
        %567 = vmatprep.subr.mxu0 0.0
        %568 = vmatpush1.msra.mxu0 0.0
        %569 = vmatprep.subr.mxu0 0.0
        %570 = vmatpush1.msra.mxu0 0.0
        %571 = vmatprep.subr.mxu0 0.0
        %572 = vmatpush1.msra.mxu0 0.0
        %573 = vmatprep.subr.mxu0 0.0
        %574 = vmatpush1.msra.mxu0 0.0
        %575 = vmatprep.subr.mxu0 0.0
        %576 = vmatpush1.msra.mxu0 0.0
        %577 = vmatprep.subr.mxu0 0.0
        %578 = vmatpush1.msra.mxu0 0.0
        %579 = vmatprep.subr.mxu0 0.0
        %580 = vmatpush1.msra.mxu0 0.0
        %581 = vmatprep.subr.mxu0 0.0
        %582 = vmatpush1.msra.mxu0 0.0
        %583 = vmatprep.mubr.f32.mxu0 0.0
        %584 = vmatmul.mubr.f32.gmra.mrb[0].mxu0 %v514
        %v585 = vpop.f32.mrb[0].mxu0
        %v586 = vadd.f32 0.0, %v585
        %v587 = vpop.f32.mrb[0].mxu0
        %588 = vmatprep.mubr.f32.mxu0 0.0
        %589 = vmatmul.mubr.f32.gmra.mrb[0].mxu0 %v517
        %v590 = vpop.f32.mrb[0].mxu0
        %v591 = vadd.f32 0.0, %v590
        %v592 = vpop.f32.mrb[0].mxu0
        %593 = vdwg.mxu0
        %v595 = vsel %vm269, %v266, 0
        %597 = vmatprep.subr.mxu0 0.0
        %598 = vmatpush1.msra.mxu0 %v343
        %599 = vmatprep.subr.mxu0 0.0
        %600 = vmatpush1.msra.mxu0 %v348
        %601 = vmatprep.subr.mxu0 0.0
        %602 = vmatpush1.msra.mxu0 0.0
        %603 = vmatprep.subr.mxu0 0.0
        %604 = vmatpush1.msra.mxu0 0.0
        %605 = vmatprep.subr.mxu0 0.0
        %606 = vmatpush1.msra.mxu0 0.0
        %607 = vmatprep.subr.mxu0 0.0
        %608 = vmatpush1.msra.mxu0 0.0
        %609 = vmatprep.subr.mxu0 0.0
        %610 = vmatpush1.msra.mxu0 0.0
        %611 = vmatprep.subr.mxu0 0.0
        %612 = vmatpush1.msra.mxu0 0.0
        %613 = vmatprep.subr.mxu0 0.0
        %614 = vmatpush1.msra.mxu0 0.0
        %615 = vmatprep.subr.mxu0 0.0
        %616 = vmatpush1.msra.mxu0 0.0
        %617 = vmatprep.subr.mxu0 0.0
        %618 = vmatpush1.msra.mxu0 0.0
        %619 = vmatprep.subr.mxu0 0.0
        %620 = vmatpush1.msra.mxu0 0.0
        %621 = vmatprep.subr.mxu0 0.0
        %622 = vmatpush1.msra.mxu0 0.0
        %623 = vmatprep.subr.mxu0 0.0
        %624 = vmatpush1.msra.mxu0 0.0
        %625 = vmatprep.subr.mxu0 0.0
        %626 = vmatpush1.msra.mxu0 0.0
        %627 = vmatprep.subr.mxu0 0.0
        %628 = vmatpush1.msra.mxu0 0.0
        %629 = vmatprep.subr.mxu0 0.0
        %630 = vmatpush1.msra.mxu0 0.0
        %631 = vmatprep.subr.mxu0 0.0
        %632 = vmatpush1.msra.mxu0 0.0
        %633 = vmatprep.subr.mxu0 0.0
        %634 = vmatpush1.msra.mxu0 0.0
        %635 = vmatprep.subr.mxu0 0.0
        %636 = vmatpush1.msra.mxu0 0.0
        %637 = vmatprep.subr.mxu0 0.0
        %638 = vmatpush1.msra.mxu0 0.0
        %639 = vmatprep.subr.mxu0 0.0
        %640 = vmatpush1.msra.mxu0 0.0
        %641 = vmatprep.subr.mxu0 0.0
        %642 = vmatpush1.msra.mxu0 0.0
        %643 = vmatprep.subr.mxu0 0.0
        %644 = vmatpush1.msra.mxu0 0.0
        %645 = vmatprep.subr.mxu0 0.0
        %646 = vmatpush1.msra.mxu0 0.0
        %647 = vmatprep.subr.mxu0 0.0
        %648 = vmatpush1.msra.mxu0 0.0
        %649 = vmatprep.subr.mxu0 0.0
        %650 = vmatpush1.msra.mxu0 0.0
        %651 = vmatprep.subr.mxu0 0.0
        %652 = vmatpush1.msra.mxu0 0.0
        %653 = vmatprep.subr.mxu0 0.0
        %654 = vmatpush1.msra.mxu0 0.0
        %655 = vmatprep.subr.mxu0 0.0
        %656 = vmatpush1.msra.mxu0 0.0
        %657 = vmatprep.subr.mxu0 0.0
        %658 = vmatpush1.msra.mxu0 0.0
        %659 = vmatprep.subr.mxu0 0.0
        %660 = vmatpush1.msra.mxu0 0.0
        %661 = vmatprep.mubr.f32.mxu0 0.0
        %662 = vmatmul.mubr.f32.gmra.mrb[0].mxu0 %v595
        %v663 = vpop.f32.mrb[0].mxu0
        %v664 = vadd.f32 0.0, %v663
        %v665 = vpop.f32.mrb[0].mxu0
        %666 = vdwg.mxu0
        %667 = vmatprep.subr.mxu0 0.0
        %668 = vmatpush1.msra.mxu0 %v424
        %669 = vmatprep.subr.mxu0 0.0
        %670 = vmatpush1.msra.mxu0 %v429
        %671 = vmatprep.subr.mxu0 0.0
        %672 = vmatpush1.msra.mxu0 0.0
        %673 = vmatprep.subr.mxu0 0.0
        %674 = vmatpush1.msra.mxu0 0.0
        %675 = vmatprep.subr.mxu0 0.0
        %676 = vmatpush1.msra.mxu0 0.0
        %677 = vmatprep.subr.mxu0 0.0
        %678 = vmatpush1.msra.mxu0 0.0
        %679 = vmatprep.subr.mxu0 0.0
        %680 = vmatpush1.msra.mxu0 0.0
        %681 = vmatprep.subr.mxu0 0.0
        %682 = vmatpush1.msra.mxu0 0.0
        %683 = vmatprep.subr.mxu0 0.0
        %684 = vmatpush1.msra.mxu0 0.0
        %685 = vmatprep.subr.mxu0 0.0
        %686 = vmatpush1.msra.mxu0 0.0
        %687 = vmatprep.subr.mxu0 0.0
        %688 = vmatpush1.msra.mxu0 0.0
        %689 = vmatprep.subr.mxu0 0.0
        %690 = vmatpush1.msra.mxu0 0.0
        %691 = vmatprep.subr.mxu0 0.0
        %692 = vmatpush1.msra.mxu0 0.0
        %693 = vmatprep.subr.mxu0 0.0
        %694 = vmatpush1.msra.mxu0 0.0
        %695 = vmatprep.subr.mxu0 0.0
        %696 = vmatpush1.msra.mxu0 0.0
        %697 = vmatprep.subr.mxu0 0.0
        %698 = vmatpush1.msra.mxu0 0.0
        %699 = vmatprep.subr.mxu0 0.0
        %700 = vmatpush1.msra.mxu0 0.0
        %701 = vmatprep.subr.mxu0 0.0
        %702 = vmatpush1.msra.mxu0 0.0
        %703 = vmatprep.subr.mxu0 0.0
        %704 = vmatpush1.msra.mxu0 0.0
        %705 = vmatprep.subr.mxu0 0.0
        %706 = vmatpush1.msra.mxu0 0.0
        %707 = vmatprep.subr.mxu0 0.0
        %708 = vmatpush1.msra.mxu0 0.0
        %709 = vmatprep.subr.mxu0 0.0
        %710 = vmatpush1.msra.mxu0 0.0
        %711 = vmatprep.subr.mxu0 0.0
        %712 = vmatpush1.msra.mxu0 0.0
        %713 = vmatprep.subr.mxu0 0.0
        %714 = vmatpush1.msra.mxu0 0.0
        %715 = vmatprep.subr.mxu0 0.0
        %716 = vmatpush1.msra.mxu0 0.0
        %717 = vmatprep.subr.mxu0 0.0
        %718 = vmatpush1.msra.mxu0 0.0
        %719 = vmatprep.subr.mxu0 0.0
        %720 = vmatpush1.msra.mxu0 0.0
        %721 = vmatprep.subr.mxu0 0.0
        %722 = vmatpush1.msra.mxu0 0.0
        %723 = vmatprep.subr.mxu0 0.0
        %724 = vmatpush1.msra.mxu0 0.0
        %725 = vmatprep.subr.mxu0 0.0
        %726 = vmatpush1.msra.mxu0 0.0
        %727 = vmatprep.subr.mxu0 0.0
        %728 = vmatpush1.msra.mxu0 0.0
        %729 = vmatprep.subr.mxu0 0.0
        %730 = vmatpush1.msra.mxu0 0.0
        %731 = vmatprep.mubr.f32.mxu0 0.0
        %732 = vmatmul.mubr.f32.gmra.mrb[0].mxu0 %v595
        %v733 = vpop.f32.mrb[0].mxu0
        %v734 = vadd.f32 0.0, %v733
        %v735 = vpop.f32.mrb[0].mxu0
        %736 = vdwg.mxu0
        %737 = vmatprep.subr.mxu0 0.0
        %738 = vmatpush1.msra.mxu0 %v505
        %739 = vmatprep.subr.mxu0 0.0
        %740 = vmatpush1.msra.mxu0 %v510
        %741 = vmatprep.subr.mxu0 0.0
        %742 = vmatpush1.msra.mxu0 0.0
        %743 = vmatprep.subr.mxu0 0.0
        %744 = vmatpush1.msra.mxu0 0.0
        %745 = vmatprep.subr.mxu0 0.0
        %746 = vmatpush1.msra.mxu0 0.0
        %747 = vmatprep.subr.mxu0 0.0
        %748 = vmatpush1.msra.mxu0 0.0
        %749 = vmatprep.subr.mxu0 0.0
        %750 = vmatpush1.msra.mxu0 0.0
        %751 = vmatprep.subr.mxu0 0.0
        %752 = vmatpush1.msra.mxu0 0.0
        %753 = vmatprep.subr.mxu0 0.0
        %754 = vmatpush1.msra.mxu0 0.0
        %755 = vmatprep.subr.mxu0 0.0
        %756 = vmatpush1.msra.mxu0 0.0
        %757 = vmatprep.subr.mxu0 0.0
        %758 = vmatpush1.msra.mxu0 0.0
        %759 = vmatprep.subr.mxu0 0.0
        %760 = vmatpush1.msra.mxu0 0.0
        %761 = vmatprep.subr.mxu0 0.0
        %762 = vmatpush1.msra.mxu0 0.0
        %763 = vmatprep.subr.mxu0 0.0
        %764 = vmatpush1.msra.mxu0 0.0
        %765 = vmatprep.subr.mxu0 0.0
        %766 = vmatpush1.msra.mxu0 0.0
        %767 = vmatprep.subr.mxu0 0.0
        %768 = vmatpush1.msra.mxu0 0.0
        %769 = vmatprep.subr.mxu0 0.0
        %770 = vmatpush1.msra.mxu0 0.0
        %771 = vmatprep.subr.mxu0 0.0
        %772 = vmatpush1.msra.mxu0 0.0
        %773 = vmatprep.subr.mxu0 0.0
        %774 = vmatpush1.msra.mxu0 0.0
        %775 = vmatprep.subr.mxu0 0.0
        %776 = vmatpush1.msra.mxu0 0.0
        %777 = vmatprep.subr.mxu0 0.0
        %778 = vmatpush1.msra.mxu0 0.0
        %779 = vmatprep.subr.mxu0 0.0
        %780 = vmatpush1.msra.mxu0 0.0
        %781 = vmatprep.subr.mxu0 0.0
        %782 = vmatpush1.msra.mxu0 0.0
        %783 = vmatprep.subr.mxu0 0.0
        %784 = vmatpush1.msra.mxu0 0.0
        %785 = vmatprep.subr.mxu0 0.0
        %786 = vmatpush1.msra.mxu0 0.0
        %787 = vmatprep.subr.mxu0 0.0
        %788 = vmatpush1.msra.mxu0 0.0
        %789 = vmatprep.subr.mxu0 0.0
        %790 = vmatpush1.msra.mxu0 0.0
        %791 = vmatprep.subr.mxu0 0.0
        %792 = vmatpush1.msra.mxu0 0.0
        %793 = vmatprep.subr.mxu0 0.0
        %794 = vmatpush1.msra.mxu0 0.0
        %795 = vmatprep.subr.mxu0 0.0
        %796 = vmatpush1.msra.mxu0 0.0
        %797 = vmatprep.subr.mxu0 0.0
        %798 = vmatpush1.msra.mxu0 0.0
        %799 = vmatprep.subr.mxu0 0.0
        %800 = vmatpush1.msra.mxu0 0.0
        %801 = vmatprep.mubr.f32.mxu0 0.0
        %802 = vmatmul.mubr.f32.gmra.mrb[0].mxu0 %v595
        %v803 = vpop.f32.mrb[0].mxu0
        %v804 = vadd.f32 0.0, %v803
        %v805 = vpop.f32.mrb[0].mxu0
        %806 = vdwg.mxu0
        %807 = vmatprep.subr.mxu0 0.0
        %808 = vmatpush1.msra.mxu0 %v586
        %809 = vmatprep.subr.mxu0 0.0
        %810 = vmatpush1.msra.mxu0 %v591
        %811 = vmatprep.subr.mxu0 0.0
        %812 = vmatpush1.msra.mxu0 0.0
        %813 = vmatprep.subr.mxu0 0.0
        %814 = vmatpush1.msra.mxu0 0.0
        %815 = vmatprep.subr.mxu0 0.0
        %816 = vmatpush1.msra.mxu0 0.0
        %817 = vmatprep.subr.mxu0 0.0
        %818 = vmatpush1.msra.mxu0 0.0
        %819 = vmatprep.subr.mxu0 0.0
        %820 = vmatpush1.msra.mxu0 0.0
        %821 = vmatprep.subr.mxu0 0.0
        %822 = vmatpush1.msra.mxu0 0.0
        %823 = vmatprep.subr.mxu0 0.0
        %824 = vmatpush1.msra.mxu0 0.0
        %825 = vmatprep.subr.mxu0 0.0
        %826 = vmatpush1.msra.mxu0 0.0
        %827 = vmatprep.subr.mxu0 0.0
        %828 = vmatpush1.msra.mxu0 0.0
        %829 = vmatprep.subr.mxu0 0.0
        %830 = vmatpush1.msra.mxu0 0.0
        %831 = vmatprep.subr.mxu0 0.0
        %832 = vmatpush1.msra.mxu0 0.0
        %833 = vmatprep.subr.mxu0 0.0
        %834 = vmatpush1.msra.mxu0 0.0
        %835 = vmatprep.subr.mxu0 0.0
        %836 = vmatpush1.msra.mxu0 0.0
        %837 = vmatprep.subr.mxu0 0.0
        %838 = vmatpush1.msra.mxu0 0.0
        %839 = vmatprep.subr.mxu0 0.0
        %840 = vmatpush1.msra.mxu0 0.0
        %841 = vmatprep.subr.mxu0 0.0
        %842 = vmatpush1.msra.mxu0 0.0
        %843 = vmatprep.subr.mxu0 0.0
        %844 = vmatpush1.msra.mxu0 0.0
        %845 = vmatprep.subr.mxu0 0.0
        %846 = vmatpush1.msra.mxu0 0.0
        %847 = vmatprep.subr.mxu0 0.0
        %848 = vmatpush1.msra.mxu0 0.0
        %849 = vmatprep.subr.mxu0 0.0
        %850 = vmatpush1.msra.mxu0 0.0
        %851 = vmatprep.subr.mxu0 0.0
        %852 = vmatpush1.msra.mxu0 0.0
        %853 = vmatprep.subr.mxu0 0.0
        %854 = vmatpush1.msra.mxu0 0.0
        %855 = vmatprep.subr.mxu0 0.0
        %856 = vmatpush1.msra.mxu0 0.0
        %857 = vmatprep.subr.mxu0 0.0
        %858 = vmatpush1.msra.mxu0 0.0
        %859 = vmatprep.subr.mxu0 0.0
        %860 = vmatpush1.msra.mxu0 0.0
        %861 = vmatprep.subr.mxu0 0.0
        %862 = vmatpush1.msra.mxu0 0.0
        %863 = vmatprep.subr.mxu0 0.0
        %864 = vmatpush1.msra.mxu0 0.0
        %865 = vmatprep.subr.mxu0 0.0
        %866 = vmatpush1.msra.mxu0 0.0
        %867 = vmatprep.subr.mxu0 0.0
        %868 = vmatpush1.msra.mxu0 0.0
        %869 = vmatprep.subr.mxu0 0.0
        %870 = vmatpush1.msra.mxu0 0.0
        %871 = vmatprep.mubr.f32.mxu0 0.0
        %872 = vmatmul.mubr.f32.gmra.mrb[0].mxu0 %v595
        %v873 = vpop.f32.mrb[0].mxu0
        %v874 = vadd.f32 0.0, %v873
        %v875 = vpop.f32.mrb[0].mxu0
        %876 = vdwg.mxu0
        %vm877 = vcmask 27648
        %878 = vst.msk [vmem:[%s245] sm:$0xf] %vm877, %v664
        %879 = vst.msk [vmem:[%s245 + $0x4] sm:$0xf] %vm877, %v734
        %880 = vst.msk [vmem:[%s245 + $0x8] sm:$0xf] %vm877, %v804
        %881 = vst.msk [vmem:[%s245 + $0xc] sm:$0xf] %vm877, %v874
        %s882 = sand.u32 %s131, 1
        %s883 = scalar_lea.sflag [#allocation6], %s882
        %s884 = sand.u32 %s131, 1
        %s885 = smul.addr %s884, 16
        %s886 = scalar_lea.vmem [#allocation7], %s885
        // Predicated region
        $region37: #{tpu_custom_call.1} parent=31 // pred_check
          %p887 = pneg %p141
        $region38: #{tpu_custom_call.1} parent=31 // pred_check_branch
          %889 = sbr.rel (%p887) target = $region40
        $region39: #{tpu_custom_call.1} parent=31 // pred_region
          %s890 = smul.u32 4, %s31
          %s892 = ssub.s32 256, 256
          %893 = vsyncadd %s883, %s892
          %s894 = smul.addr %s32, 4
          %s895 = sadd.s32 %s890, %s894
          %s896 = smul.addr %s895, 64
          %s897 = scalar_lea.hbm %s4, %s896
          %s898 = sshll.u32 %s886, 4
          %s899 = int_to_ptr.vmem [resolvable:$true] %s898
          %904 = dma.vmem_to_hbm [thread:$0]  %s899, 256, %s897, %s883, 64, 64, 4
        $region40: #{tpu_custom_call.1} parent=31 // pred_fallthru
          _
      $region32: #{tpu_custom_call.1} parent=5 // pred_fallthru
        _
      %p905 = scmp.le.s32.totalorder 2, %s22
      // Predicated region
      $region41: #{tpu_custom_call.1} parent=5 // pred_check
        %p906 = pneg %p905
      $region42: #{tpu_custom_call.1} parent=5 // pred_check_branch
        %908 = sbr.rel (%p906) target = $region44
      $region43: #{tpu_custom_call.1} parent=5 // pred_region
        %s909 = ssub.s32 %s22, 2
        // Predicated region
        $region45: #{tpu_custom_call.1} parent=43 // pred_check
          %p910 = pneg %p147
        $region46: #{tpu_custom_call.1} parent=43 // pred_check_branch
          %912 = sbr.rel (%p910) target = $region48
        $region47: #{tpu_custom_call.1} parent=43 // pred_region
          %s913 = sand.u32 %s132, 1
          %s914 = scalar_lea.sflag [#allocation6], %s913
          %s915 = sand.u32 %s132, 1
          %s916 = smul.addr %s915, 16
          %s917 = scalar_lea.vmem [#allocation7], %s916
          %918 = dma.done %s914, 256
        $region48: #{tpu_custom_call.1} parent=43 // pred_fallthru
          _
      $region44: #{tpu_custom_call.1} parent=5 // pred_fallthru
        _
    $region6: #{tpu_custom_call.1} parent=1 // loop_footer
      %s26 = sadd.s32 1, %s22
    $region7: #{tpu_custom_call.1} parent=1 // loop_footer_branch
      %21 = sbr.rel target = $region3
    $region8: #{tpu_custom_call.1} parent=1 // loop_exit
      _
    %919 = vsyncpa [#allocation5], 1
    %s920 = scalar_lea.sflag [#allocation5], 1
    %921 = vsyncpa %s920, 1
    %922 = vsyncpa [#allocation6], 1
    %s923 = scalar_lea.sflag [#allocation6], 1
    %924 = vsyncpa %s923, 1

</llo_original>
